<compile_context>
chip_gen: v5e
topology: v5e:2x2
jax: 0.10.0
libtpu: 0.0.40
codegen_flags: <defaults>
</compile_context>

<pallas_src>
import functools

import jax
import jax.numpy as jnp
from jax.experimental import pallas as pl
from jax.experimental.pallas import tpu as pltpu


def _ws_readout_kernel(seq_ref, q_ref, o_ref, m_sc, l_sc, acc_sc, *,
                       n_valid, tile_n):
    # seq_ref: (1, TILE_N, D_pad) VMEM  -- tile of the node sequence
    # q_ref:   (1, 1, D_pad)      VMEM  -- per-graph query vector
    # o_ref:   (1, 1, D_pad)      VMEM  -- readout (written on last N tile)
    # m_sc/l_sc: (1, 1) f32 running max / softmax denominator
    # acc_sc:  (1, D_pad) f32 running weighted sum
    n_idx = pl.program_id(1)

    @pl.when(n_idx == 0)
    def _():
        m_sc[...] = jnp.full_like(m_sc, -jnp.inf)
        l_sc[...] = jnp.zeros_like(l_sc)
        acc_sc[...] = jnp.zeros_like(acc_sc)

    seq = seq_ref[0].astype(jnp.float32)        # (TILE_N, D_pad)
    q = q_ref[0].astype(jnp.float32)            # (1, D_pad)

    # sim = seq @ query^T : one score per node. Lane mul + lane reduce on the
    # VPU/XLU (an MXU matmul with a 1-wide output would be <1% utilized).
    s = jnp.sum(seq * q, axis=-1, keepdims=True)            # (TILE_N, 1)

    # Mask node-padding rows (N was rounded up to a multiple of TILE_N).
    row = n_idx * tile_n + jax.lax.broadcasted_iota(jnp.int32, (tile_n, 1), 0)
    s = jnp.where(row < n_valid, s, -jnp.inf)

    # Online softmax accumulation across N tiles.
    m_prev = m_sc[...]                                        # (1, 1)
    m_new = jnp.maximum(m_prev, jnp.max(s, axis=0, keepdims=True))
    alpha = jnp.exp(m_prev - m_new)                           # (1, 1)
    p = jnp.exp(s - m_new)                                    # (TILE_N, 1)

    l_sc[...] = alpha * l_sc[...] + jnp.sum(p, axis=0, keepdims=True)
    acc_sc[...] = alpha * acc_sc[...] + jnp.sum(p * seq, axis=0, keepdims=True)
    m_sc[...] = m_new

    @pl.when(n_idx == pl.num_programs(1) - 1)
    def _():
        o_ref[0] = (acc_sc[...] / l_sc[...]).astype(o_ref.dtype)


def ws_readout(seq, query, *, tile_n=512):
    """seq: (B, N, D), query: (B, 1, D) -> (B, D) softmax-weighted readout."""
    B, N, D = seq.shape
    assert query.shape == (B, 1, D)
    assert tile_n % 8 == 0

    d_pad = pl.cdiv(D, 128) * 128          # lane-dense feature dim
    n_pad = pl.cdiv(N, tile_n) * tile_n    # node dim rounded to the tile

    seq_p = jnp.pad(seq, ((0, 0), (0, n_pad - N), (0, d_pad - D)))
    q_p = jnp.pad(query, ((0, 0), (0, 0), (0, d_pad - D)))

    grid = (B, n_pad // tile_n)

    out = pl.pallas_call(
        functools.partial(_ws_readout_kernel, n_valid=N, tile_n=tile_n),
        out_shape=jax.ShapeDtypeStruct((B, 1, d_pad), jnp.float32),
        grid_spec=pltpu.PrefetchScalarGridSpec(
            num_scalar_prefetch=0,
            grid=grid,
            in_specs=[
                pl.BlockSpec((1, tile_n, d_pad), lambda b, n: (b, n, 0)),  # seq
                pl.BlockSpec((1, 1, d_pad), lambda b, n: (b, 0, 0)),       # query
            ],
            out_specs=pl.BlockSpec((1, 1, d_pad), lambda b, n: (b, 0, 0)),
            scratch_shapes=[
                pltpu.VMEM((1, 1), jnp.float32),       # running max
                pltpu.VMEM((1, 1), jnp.float32),       # running denom
                pltpu.VMEM((1, d_pad), jnp.float32),   # running weighted sum
            ],
        ),
        compiler_params=pltpu.CompilerParams(
            dimension_semantics=("parallel", "arbitrary")),
    )(seq_p, q_p)

    return out[:, 0, :D].astype(seq.dtype)


def _reference_forward(seq, query):
    """Pure-JAX mirror of the PyTorch WSReadout.forward."""
    q_t = jnp.transpose(query, (0, 2, 1))            # (B, D, 1)
    sim = jnp.matmul(seq, q_t)                       # (B, N, 1)
    sim = jax.nn.softmax(sim, axis=1)
    sim = jnp.tile(sim, (1, 1, seq.shape[-1]))       # torch .repeat(1, 1, 64)
    out = jnp.sum(seq * sim, axis=1)                 # (B, D)
    return out


if __name__ == "__main__":
    B, N, D = 2, 300, 64   # D=64 matches the hard-coded repeat(1,1,64)
    key = jax.random.PRNGKey(0)
    k_seq, k_q = jax.random.split(key)
    seq = jax.random.normal(k_seq, (B, N, D), dtype=jnp.float32)
    query = jax.random.normal(k_q, (B, 1, D), dtype=jnp.float32)

    # tile_n=128 -> 3 node tiles, the last one partially masked (N=300).
    out = ws_readout(seq, query, tile_n=128)
    out = jax.block_until_ready(out)

    ref = _reference_forward(seq, query)
    assert out.shape == (B, D), out.shape
    assert jnp.allclose(out, ref, atol=1e-4, rtol=1e-4), \
        float(jnp.max(jnp.abs(out - ref)))

    print("KERNEL_OK")
</pallas_src>

<mosaic_0001>
module attributes {stable_mosaic.version = 11 : i64} {
  func.func @_ws_readout_kernel(%arg0: i32, %arg1: i32, %arg2: memref<1x128x128xf32, #tpu.memory_space<vmem>>, %arg3: memref<1x1x128xf32, #tpu.memory_space<vmem>>, %arg4: memref<1x1x128xf32, #tpu.memory_space<vmem>>, %arg5: memref<1x1xf32, #tpu.memory_space<vmem>>, %arg6: memref<1x1xf32, #tpu.memory_space<vmem>>, %arg7: memref<1x128xf32, #tpu.memory_space<vmem>>) attributes {dimension_semantics = [#tpu.dimension_semantics<parallel>, #tpu.dimension_semantics<arbitrary>], iteration_bounds = array<i64: 2, 3>, scalar_prefetch = 0 : i64, scratch_operands = 3 : i64, tpu.core_type = #tpu.core_type<tc>, window_params = [{transform_indices = @transform_0, window_bounds = array<i64: 1, 128, 128>}, {transform_indices = @transform_1, window_bounds = array<i64: 1, 1, 128>}, {transform_indices = @transform_2, window_bounds = array<i64: 1, 1, 128>}]} {
    %c0_i32 = arith.constant 0 : i32
    %0 = arith.cmpi eq, %arg1, %c0_i32 : i32
    %1 = arith.extui %0 : i1 to i32
    %c0_i32_0 = arith.constant 0 : i32
    %2 = arith.cmpi ne, %1, %c0_i32_0 : i32
    scf.if %2 {
      %cst_23 = arith.constant 0xFF800000 : f32
      %47 = vector.broadcast %cst_23 : f32 to vector<1x1xf32>
      %c0_24 = arith.constant 0 : index
      %c0_25 = arith.constant 0 : index
      %48 = vector.load %arg5[%c0_24, %c0_25] : memref<1x1xf32, #tpu.memory_space<vmem>>, vector<1x1xf32>
      tpu.vector_store %arg5[%c0_24, %c0_25], %47 {strides = array<i32>} : memref<1x1xf32, #tpu.memory_space<vmem>>, vector<1x1xf32>,
      %cst_26 = arith.constant 0.000000e+00 : f32
      %49 = vector.broadcast %cst_26 : f32 to vector<1x1xf32>
      %c0_27 = arith.constant 0 : index
      %c0_28 = arith.constant 0 : index
      %50 = vector.load %arg6[%c0_27, %c0_28] : memref<1x1xf32, #tpu.memory_space<vmem>>, vector<1x1xf32>
      tpu.vector_store %arg6[%c0_27, %c0_28], %49 {strides = array<i32>} : memref<1x1xf32, #tpu.memory_space<vmem>>, vector<1x1xf32>,
      %cst_29 = arith.constant 0.000000e+00 : f32
      %51 = vector.broadcast %cst_29 : f32 to vector<1x128xf32>
      %c0_30 = arith.constant 0 : index
      %c0_31 = arith.constant 0 : index
      %52 = vector.load %arg7[%c0_30, %c0_31] : memref<1x128xf32, #tpu.memory_space<vmem>>, vector<1x128xf32>
      tpu.vector_store %arg7[%c0_30, %c0_31], %51 {strides = array<i32>} : memref<1x128xf32, #tpu.memory_space<vmem>>, vector<1x128xf32>,
    } else {
    }
    %c0 = arith.constant 0 : index
    %c0_1 = arith.constant 0 : index
    %c0_2 = arith.constant 0 : index
    %3 = vector.load %arg2[%c0, %c0_1, %c0_2] : memref<1x128x128xf32, #tpu.memory_space<vmem>>, vector<1x128x128xf32>
    %4 = vector.shape_cast %3 : vector<1x128x128xf32> to vector<128x128xf32>
    %c0_3 = arith.constant 0 : index
    %c0_4 = arith.constant 0 : index
    %c0_5 = arith.constant 0 : index
    %5 = vector.load %arg3[%c0_3, %c0_4, %c0_5] : memref<1x1x128xf32, #tpu.memory_space<vmem>>, vector<1x1x128xf32>
    %6 = vector.shape_cast %5 : vector<1x1x128xf32> to vector<1x128xf32>
    %7 = vector.broadcast %6 : vector<1x128xf32> to vector<128x128xf32>
    %8 = arith.mulf %4, %7 : vector<128x128xf32>
    %cst = arith.constant dense<0.000000e+00> : vector<128xf32>
    %9 = vector.multi_reduction <add>, %8, %cst [1] : vector<128x128xf32> to vector<128xf32>
    %10 = vector.shape_cast %9 : vector<128xf32> to vector<128x1xf32>
    %c128_i32 = arith.constant 128 : i32
    %11 = arith.muli %arg1, %c128_i32 : i32
    %12 = tpu.iota {dimensions = array<i32: 0>} : vector<128x1xi32>
    %13 = vector.broadcast %11 : i32 to vector<128x1xi32>
    %14 = arith.addi %13, %12 : vector<128x1xi32>
    %c300_i32 = arith.constant 300 : i32
    %15 = vector.broadcast %c300_i32 : i32 to vector<128x1xi32>
    %16 = arith.cmpi slt, %14, %15 : vector<128x1xi32>
    %cst_6 = arith.constant 0xFF800000 : f32
    %17 = vector.broadcast %cst_6 : f32 to vector<128x1xf32>
    %18 = arith.select %16, %10, %17 : vector<128x1xi1>, vector<128x1xf32>
    %c0_7 = arith.constant 0 : index
    %c0_8 = arith.constant 0 : index
    %19 = vector.load %arg5[%c0_7, %c0_8] : memref<1x1xf32, #tpu.memory_space<vmem>>, vector<1x1xf32>
    %cst_9 = arith.constant dense<0xFF800000> : vector<1xf32>
    %20 = vector.multi_reduction <maximumf>, %18, %cst_9 [0] : vector<128x1xf32> to vector<1xf32>
    %21 = vector.shape_cast %20 : vector<1xf32> to vector<1x1xf32>
    %22 = arith.maximumf %19, %21 : vector<1x1xf32>
    %23 = arith.subf %19, %22 : vector<1x1xf32>
    %24 = math.exp %23 : vector<1x1xf32>
    %25 = vector.broadcast %22 : vector<1x1xf32> to vector<128x1xf32>
    %26 = arith.subf %18, %25 : vector<128x1xf32>
    %27 = math.exp %26 : vector<128x1xf32>
    %c0_10 = arith.constant 0 : index
    %c0_11 = arith.constant 0 : index
    %28 = vector.load %arg6[%c0_10, %c0_11] : memref<1x1xf32, #tpu.memory_space<vmem>>, vector<1x1xf32>
    %29 = arith.mulf %24, %28 : vector<1x1xf32>
    %cst_12 = arith.constant dense<0.000000e+00> : vector<1xf32>
    %30 = vector.multi_reduction <add>, %27, %cst_12 [0] : vector<128x1xf32> to vector<1xf32>
    %31 = vector.shape_cast %30 : vector<1xf32> to vector<1x1xf32>
    %32 = arith.addf %29, %31 : vector<1x1xf32>
    %c0_13 = arith.constant 0 : index
    %c0_14 = arith.constant 0 : index
    %33 = vector.load %arg6[%c0_13, %c0_14] : memref<1x1xf32, #tpu.memory_space<vmem>>, vector<1x1xf32>
    tpu.vector_store %arg6[%c0_13, %c0_14], %32 {strides = array<i32>} : memref<1x1xf32, #tpu.memory_space<vmem>>, vector<1x1xf32>,
    %c0_15 = arith.constant 0 : index
    %c0_16 = arith.constant 0 : index
    %34 = vector.load %arg7[%c0_15, %c0_16] : memref<1x128xf32, #tpu.memory_space<vmem>>, vector<1x128xf32>
    %35 = vector.broadcast %24 : vector<1x1xf32> to vector<1x128xf32>
    %36 = arith.mulf %35, %34 : vector<1x128xf32>
    %37 = vector.broadcast %27 : vector<128x1xf32> to vector<128x128xf32>
    %38 = arith.mulf %37, %4 : vector<128x128xf32>
    %cst_17 = arith.constant dense<0.000000e+00> : vector<128xf32>
    %39 = vector.multi_reduction <add>, %38, %cst_17 [0] : vector<128x128xf32> to vector<128xf32>
    %40 = vector.shape_cast %39 : vector<128xf32> to vector<1x128xf32>
    %41 = arith.addf %36, %40 : vector<1x128xf32>
    %c0_18 = arith.constant 0 : index
    %c0_19 = arith.constant 0 : index
    %42 = vector.load %arg7[%c0_18, %c0_19] : memref<1x128xf32, #tpu.memory_space<vmem>>, vector<1x128xf32>
    tpu.vector_store %arg7[%c0_18, %c0_19], %41 {strides = array<i32>} : memref<1x128xf32, #tpu.memory_space<vmem>>, vector<1x128xf32>,
    %c0_20 = arith.constant 0 : index
    %c0_21 = arith.constant 0 : index
    %43 = vector.load %arg5[%c0_20, %c0_21] : memref<1x1xf32, #tpu.memory_space<vmem>>, vector<1x1xf32>
    tpu.vector_store %arg5[%c0_20, %c0_21], %22 {strides = array<i32>} : memref<1x1xf32, #tpu.memory_space<vmem>>, vector<1x1xf32>,
    %c2_i32 = arith.constant 2 : i32
    %44 = arith.cmpi eq, %arg1, %c2_i32 : i32
    %45 = arith.extui %44 : i1 to i32
    %c0_i32_22 = arith.constant 0 : i32
    %46 = arith.cmpi ne, %45, %c0_i32_22 : i32
    scf.if %46 {
      %c0_23 = arith.constant 0 : index
      %c0_24 = arith.constant 0 : index
      %47 = vector.load %arg7[%c0_23, %c0_24] : memref<1x128xf32, #tpu.memory_space<vmem>>, vector<1x128xf32>
      %c0_25 = arith.constant 0 : index
      %c0_26 = arith.constant 0 : index
      %48 = vector.load %arg6[%c0_25, %c0_26] : memref<1x1xf32, #tpu.memory_space<vmem>>, vector<1x1xf32>
      %49 = vector.broadcast %48 : vector<1x1xf32> to vector<1x128xf32>
      %50 = arith.divf %47, %49 : vector<1x128xf32>
      %c0_27 = arith.constant 0 : index
      %c0_28 = arith.constant 0 : index
      %c0_29 = arith.constant 0 : index
      %51 = vector.load %arg4[%c0_27, %c0_28, %c0_29] : memref<1x1x128xf32, #tpu.memory_space<vmem>>, vector<1x1x128xf32>
      %52 = vector.shape_cast %51 : vector<1x1x128xf32> to vector<1x128xf32>
      %53 = vector.shape_cast %50 : vector<1x128xf32> to vector<1x1x128xf32>
      tpu.vector_store %arg4[%c0_27, %c0_28, %c0_29], %53 {strides = array<i32>} : memref<1x1x128xf32, #tpu.memory_space<vmem>>, vector<1x1x128xf32>,
    } else {
    }
    return
  }
  func.func @transform_0(%arg0: i32, %arg1: i32) -> (i32, i32, i32) {
    %c0_i32 = arith.constant 0 : i32
    %c0_i32_0 = arith.constant 0 : i32
    return %arg0, %arg1, %c0_i32 : i32, i32, i32
  }
  func.func @transform_1(%arg0: i32, %arg1: i32) -> (i32, i32, i32) {
    %c0_i32 = arith.constant 0 : i32
    %c0_i32_0 = arith.constant 0 : i32
    %c0_i32_1 = arith.constant 0 : i32
    return %arg0, %c0_i32, %c0_i32_0 : i32, i32, i32
  }
  func.func @transform_2(%arg0: i32, %arg1: i32) -> (i32, i32, i32) {
    %c0_i32 = arith.constant 0 : i32
    %c0_i32_0 = arith.constant 0 : i32
    %c0_i32_1 = arith.constant 0 : i32
    return %arg0, %c0_i32, %c0_i32_0 : i32, i32, i32
  }
}

</mosaic_0001>

<llo_original>
// kernel: tpu_custom_call.1
$region0: #{tpu_custom_call.1}
  #allocation0 [shape = 'u32[]', space=smem, size = 0x4, offset = 0x4, fixed_abs, tag = 'smem constant byte address 0x4 - core index']
  #allocation1 [shape = 'u32[72,128]{1,0:T(1,128)}', space=vmem, size = 0x9000, scoped, tag = 'internal scratch']
  #allocation2 [shape = 'f32[1,1]{1,0:T(1,128)}', space=vmem, size = 0x200, scoped, tag = 'scratch operand']
  #allocation3 [shape = 'f32[1,1]{1,0:T(1,128)}', space=vmem, size = 0x200, scoped, tag = 'scratch operand']
  #allocation4 [shape = 'f32[1,128]{1,0:T(1,128)}', space=vmem, size = 0x200, scoped, tag = 'scratch operand']
  %s0 = inlined_call_operand.hbm [shape: f32[2,384,128], index: 0, kind: input, shape index: {}]
  %s1 = inlined_call_operand.hbm [shape: f32[2,1,128], index: 1, kind: input, shape index: {}]
  %s2 = inlined_call_operand.hbm [shape: f32[2,1,128], index: 2, kind: output, shape index: {}]
  %s3 = sld [smem:[#allocation0]]
  $region57: #{tpu_custom_call.1} parent=0
    _
  %s5 = ssub.s32 1, %s3
  %s6 = scalar_select 0, %s5, %s3
  $region1: #{tpu_custom_call.1} parent=0
    #allocation5 [shape = 'u8[131072]{0}', space=vmem, size = 0x20000, scoped, tag = 'input window, operand 0']
    #allocation6 [shape = 's32[2]{0}', space=sflag, size = 0x8, scoped, tag = 'scoped memory for tpu_custom_call.1']
    #allocation7 [shape = 's32[2]{0}', space=sflag, size = 0x8, scoped, tag = 'scoped memory for tpu_custom_call.1']
    #allocation8 [shape = 'u8[1024]{0}', space=vmem, size = 0x400, scoped, tag = 'input window, operand 1']
    #allocation9 [shape = 's32[2]{0}', space=sflag, size = 0x8, scoped, tag = 'scoped memory for tpu_custom_call.1']
    #allocation10 [shape = 'u8[1024]{0}', space=vmem, size = 0x400, scoped, tag = 'output window, operand 0']
    %7 = vsyncpa [#allocation6], 0
    %s8 = scalar_lea.sflag [#allocation6], 1
    %9 = vsyncpa %s8, 0
    %10 = vsyncpa [#allocation9], 0
    %s11 = scalar_lea.sflag [#allocation9], 1
    %12 = vsyncpa %s11, 0
    %13 = vsyncpa [#allocation7], 0
    %s14 = scalar_lea.sflag [#allocation7], 1
    %15 = vsyncpa %s14, 0
    loop: start=0, step=1, limit=8
    $region2: #{tpu_custom_call.1} parent=1 // loop_pre_header
      _
    $region3: #{tpu_custom_call.1} parent=1 // loop_header
      %s17 = sphi 0, %s21
      %p18 = scmp.ge.s32.totalorder %s17, 8
      %s24 = sphi 0, %s36
      %s25 = sphi 0, %s32
      %s26 = sphi 0, %s24
      %s27 = sphi 0, %s25
      %s28 = sphi 0, %s26
      %s29 = sphi 0, %s27
      %s41 = sphi 0, %s43
      %s44 = sphi 0, %s41
      %s45 = sphi 0, %s44
      %s61 = sphi 0, %s45
      %s67 = sphi 0, %s69
      %s70 = sphi 0, %s67
      %s71 = sphi 0, %s70
      %s87 = sphi 0, %s71
      %s93 = sphi 0, %s95
      %s96 = sphi 0, %s93
      %s97 = sphi 0, %s96
      %s113 = sphi 0, %s97
    $region4: #{tpu_custom_call.1} parent=1 // loop_header_branch
      %20 = sbr.rel (%p18) target = $region8
    $region5: #{tpu_custom_call.1} parent=1 // loop_body
      %s22 = ssub.s32 %s17, 1
      %s23 = ssub.s32 %s17, 2
      %s30 = sadd.s32 1, %s25
      %p31 = scmp.ge.s32.totalorder %s30, 3
      %s32 = scalar_select %p31, 0, %s30
      %s33 = sadd.s32 1, %s24
      %s34 = scalar_select %p31, %s33, %s24
      %p35 = scmp.ge.s32.totalorder %s34, 2
      %s36 = scalar_select %p35, 0, %s34
      %s37 = ssub.s32 %s24, %s36
      %s38 = ssub.s32 %s25, %s32
      %s39 = sor.u32 %s37, %s38
      %p40 = scmp.eq.s32.totalorder %s39, 0
      %s42 = sadd.s32 %s41, 1
      %s43 = scalar_select %p40, %s41, %s42
      %p46 = pneg %p40
      %p47 = scmp.eq.s32.totalorder %s17, 5
      %p48 = por %p46, %p47
      %p49 = scmp.ne.s32.totalorder %s41, %s44
      %p50 = scmp.eq.s32.totalorder %s17, 0
      %p51 = por %p49, %p50
      %p52 = scmp.ne.s32.totalorder %s41, %s44
      %p53 = scmp.eq.s32.totalorder %s22, 5
      %p54 = por %p52, %p53
      %p55 = scmp.ne.s32.totalorder %s44, %s45
      %p56 = scmp.eq.s32.totalorder %s22, 0
      %p57 = por %p55, %p56
      %p58 = scmp.ne.s32.totalorder %s44, %s45
      %p59 = scmp.eq.s32.totalorder %s23, 5
      %p60 = por %p58, %p59
      %p62 = scmp.ne.s32.totalorder %s45, %s61
      %p63 = scmp.eq.s32.totalorder %s23, 0
      %p64 = por %p62, %p63
      %s65 = ssub.s32 %s24, %s36
      %p66 = scmp.eq.s32.totalorder %s65, 0
      %s68 = sadd.s32 %s67, 1
      %s69 = scalar_select %p66, %s67, %s68
      %p72 = pneg %p66
      %p73 = scmp.eq.s32.totalorder %s17, 5
      %p74 = por %p72, %p73
      %p75 = scmp.ne.s32.totalorder %s67, %s70
      %p76 = scmp.eq.s32.totalorder %s17, 0
      %p77 = por %p75, %p76
      %p78 = scmp.ne.s32.totalorder %s67, %s70
      %p79 = scmp.eq.s32.totalorder %s22, 5
      %p80 = por %p78, %p79
      %p81 = scmp.ne.s32.totalorder %s70, %s71
      %p82 = scmp.eq.s32.totalorder %s22, 0
      %p83 = por %p81, %p82
      %p84 = scmp.ne.s32.totalorder %s70, %s71
      %p85 = scmp.eq.s32.totalorder %s23, 5
      %p86 = por %p84, %p85
      %p88 = scmp.ne.s32.totalorder %s71, %s87
      %p89 = scmp.eq.s32.totalorder %s23, 0
      %p90 = por %p88, %p89
      %s91 = ssub.s32 %s24, %s36
      %p92 = scmp.eq.s32.totalorder %s91, 0
      %s94 = sadd.s32 %s93, 1
      %s95 = scalar_select %p92, %s93, %s94
      %p98 = pneg %p92
      %p99 = scmp.eq.s32.totalorder %s17, 5
      %p100 = por %p98, %p99
      %p101 = scmp.ne.s32.totalorder %s93, %s96
      %p102 = scmp.eq.s32.totalorder %s17, 0
      %p103 = por %p101, %p102
      %p104 = scmp.ne.s32.totalorder %s93, %s96
      %p105 = scmp.eq.s32.totalorder %s22, 5
      %p106 = por %p104, %p105
      %p107 = scmp.ne.s32.totalorder %s96, %s97
      %p108 = scmp.eq.s32.totalorder %s22, 0
      %p109 = por %p107, %p108
      %p110 = scmp.ne.s32.totalorder %s96, %s97
      %p111 = scmp.eq.s32.totalorder %s23, 5
      %p112 = por %p110, %p111
      %p114 = scmp.ne.s32.totalorder %s97, %s113
      %p115 = scmp.eq.s32.totalorder %s23, 0
      %p116 = por %p114, %p115
      %p117 = scmp.le.s32.totalorder 1, %s17
      %p118 = scmp.lt.s32.totalorder %s17, 7
      %p119 = pnand %p117, %p118
      %p120 = pneg %p119
      // Predicated region
      $region9: #{tpu_custom_call.1} parent=5 // pred_check
        _
      $region10: #{tpu_custom_call.1} parent=5 // pred_check_branch
        %122 = sbr.rel (%p119) target = $region12
      $region11: #{tpu_custom_call.1} parent=5 // pred_region
        %s123 = ssub.s32 %s17, 1
      $region12: #{tpu_custom_call.1} parent=5 // pred_fallthru
        _
      %p124 = scmp.lt.s32.totalorder %s17, 6
      // Predicated region
      $region13: #{tpu_custom_call.1} parent=5 // pred_check
        %p125 = pneg %p124
      $region14: #{tpu_custom_call.1} parent=5 // pred_check_branch
        %127 = sbr.rel (%p125) target = $region16
      $region15: #{tpu_custom_call.1} parent=5 // pred_region
        // Predicated region
        $region17: #{tpu_custom_call.1} parent=15 // pred_check
          %p128 = pneg %p51
        $region18: #{tpu_custom_call.1} parent=15 // pred_check_branch
          %130 = sbr.rel (%p128) target = $region20
        $region19: #{tpu_custom_call.1} parent=15 // pred_region
          %s131 = sand.u32 %s41, 1
          %s132 = scalar_lea.sflag [#allocation6], %s131
          %s133 = sand.u32 %s41, 1
          %s134 = smul.addr %s133, 128
          %s135 = scalar_lea.vmem [#allocation5], %s134
          %s136 = smul.u32 16, %s25
          %138 = vsyncadd %s132, 0
          %s139 = smul.addr %s24, 48
          %s140 = sadd.s32 %s136, %s139
          %s141 = smul.addr %s140, 8
          %s142 = scalar_lea.hbm %s0, %s141
          %s143 = sshll.u32 %s142, 4
          %s144 = int_to_ptr.hbm [resolvable:$true] %s143
          %s145 = sshll.u32 %s135, 4
          %s146 = int_to_ptr.vmem [resolvable:$true] %s145
          %151 = dma.hbm_to_vmem [thread:$0]  %s144, 2048, %s146, %s132, 128, 128, 8
        $region20: #{tpu_custom_call.1} parent=15 // pred_fallthru
          _
        // Predicated region
        $region21: #{tpu_custom_call.1} parent=15 // pred_check
          %p152 = pneg %p77
        $region22: #{tpu_custom_call.1} parent=15 // pred_check_branch
          %154 = sbr.rel (%p152) target = $region24
        $region23: #{tpu_custom_call.1} parent=15 // pred_region
          %s155 = sand.u32 %s67, 1
          %s156 = scalar_lea.sflag [#allocation9], %s155
          %s157 = sand.u32 %s67, 1
          %s158 = scalar_lea.vmem [#allocation8], %s157
          %160 = vsyncadd %s156, 0
          %s161 = scalar_lea.hbm %s1, %s24
          %s163 = sshll.u32 %s161, 4
          %s164 = int_to_ptr.hbm [resolvable:$true] %s163
          %s165 = sshll.u32 %s158, 4
          %s166 = int_to_ptr.vmem [resolvable:$true] %s165
          %168 = dma.hbm_to_vmem [thread:$0]  %s164, 16, %s166, %s156
        $region24: #{tpu_custom_call.1} parent=15 // pred_fallthru
          _
      $region16: #{tpu_custom_call.1} parent=5 // pred_fallthru
        _
      %p169 = scmp.le.s32.totalorder 1, %s17
      %p170 = scmp.lt.s32.totalorder %s17, 7
      %p171 = pnand %p169, %p170
      %p172 = pneg %p171
      // Predicated region
      $region25: #{tpu_custom_call.1} parent=5 // pred_check
        _
      $region26: #{tpu_custom_call.1} parent=5 // pred_check_branch
        %174 = sbr.rel (%p171) target = $region28
      $region27: #{tpu_custom_call.1} parent=5 // pred_region
        %s175 = ssub.s32 %s17, 1
        %s176 = sand.u32 %s44, 1
        %s177 = scalar_lea.sflag [#allocation6], %s176
        %s178 = sand.u32 %s44, 1
        %s179 = smul.addr %s178, 128
        %s180 = scalar_lea.vmem [#allocation5], %s179
        // Predicated region
        $region29: #{tpu_custom_call.1} parent=27 // pred_check
          %p181 = pneg %p57
        $region30: #{tpu_custom_call.1} parent=27 // pred_check_branch
          %183 = sbr.rel (%p181) target = $region32
        $region31: #{tpu_custom_call.1} parent=27 // pred_region
          %185 = dma.done %s177, 2048
        $region32: #{tpu_custom_call.1} parent=27 // pred_fallthru
          _
        %s186 = sand.u32 %s70, 1
        %s187 = scalar_lea.sflag [#allocation9], %s186
        %s188 = sand.u32 %s70, 1
        %s189 = scalar_lea.vmem [#allocation8], %s188
        // Predicated region
        $region33: #{tpu_custom_call.1} parent=27 // pred_check
          %p190 = pneg %p83
        $region34: #{tpu_custom_call.1} parent=27 // pred_check_branch
          %192 = sbr.rel (%p190) target = $region36
        $region35: #{tpu_custom_call.1} parent=27 // pred_region
          %194 = dma.done %s187, 16
        $region36: #{tpu_custom_call.1} parent=27 // pred_fallthru
          _
        %s195 = sand.u32 %s44, 1
        %s196 = scalar_lea.sflag [#allocation6], %s195
        %s197 = sand.u32 %s44, 1
        %s198 = smul.addr %s197, 128
        %s199 = scalar_lea.vmem [#allocation5], %s198
        %p200 = pneg %p57
        %p201 = pneg %p54
        %s202 = sand.u32 %s70, 1
        %s203 = scalar_lea.sflag [#allocation9], %s202
        %s204 = sand.u32 %s70, 1
        %s205 = scalar_lea.vmem [#allocation8], %s204
        %p206 = pneg %p83
        %p207 = pneg %p80
        %p208 = pneg %p109
        %p209 = pneg %p106
        %s210 = sand.u32 %s96, 1
        %s211 = scalar_lea.sflag [#allocation7], %s210
        %s212 = sand.u32 %s96, 1
        %s213 = scalar_lea.vmem [#allocation10], %s212
        %s214 = smul.u32 16, %s27
        %p215 = scmp.eq.s32.totalorder %s27, 0
        // Predicated region
        $region37: #{tpu_custom_call.1} parent=27 // pred_check
          %p216 = pneg %p215
        $region38: #{tpu_custom_call.1} parent=27 // pred_check_branch
          %218 = sbr.rel (%p216) target = $region40
        $region39: #{tpu_custom_call.1} parent=27 // pred_region
          %vm219 = vcmask 0
          %220 = vst.msk [vmem:[#allocation2] sm:$0x1] %vm219, -inf
          %221 = vst.msk [vmem:[#allocation3] sm:$0x1] %vm219, 0.0
          %222 = vst [vmem:[#allocation4] sm:$0x1] 0.0
        $region40: #{tpu_custom_call.1} parent=27 // pred_fallthru
          _
        %v223 = vld [vmem:[%s180] sm:$0xff]
        %v224 = vld [vmem:[%s180 + $0x8] sm:$0xff]
        %v225 = vld [vmem:[%s180 + $0x10] sm:$0xff]
        %v226 = vld [vmem:[%s180 + $0x18] sm:$0xff]
        %v227 = vld [vmem:[%s180 + $0x20] sm:$0xff]
        %v228 = vld [vmem:[%s180 + $0x28] sm:$0xff]
        %v229 = vld [vmem:[%s180 + $0x30] sm:$0xff]
        %v230 = vld [vmem:[%s180 + $0x38] sm:$0xff]
        %v231 = vld [vmem:[%s180 + $0x40] sm:$0xff]
        %v232 = vld [vmem:[%s180 + $0x48] sm:$0xff]
        %v233 = vld [vmem:[%s180 + $0x50] sm:$0xff]
        %v234 = vld [vmem:[%s180 + $0x58] sm:$0xff]
        %v235 = vld [vmem:[%s180 + $0x60] sm:$0xff]
        %v236 = vld [vmem:[%s180 + $0x68] sm:$0xff]
        %v237 = vld [vmem:[%s180 + $0x70] sm:$0xff]
        %v238 = vld [vmem:[%s180 + $0x78] sm:$0xff]
        %v239 = vld [vmem:[%s189] sm:$0x1]
        %v241 = vperm.slane %v239, 0
        %v243 = vmul.f32 %v223, %v241
        %v244 = vmul.f32 %v224, %v241
        %v245 = vmul.f32 %v225, %v241
        %v246 = vmul.f32 %v226, %v241
        %v247 = vmul.f32 %v227, %v241
        %v248 = vmul.f32 %v228, %v241
        %v249 = vmul.f32 %v229, %v241
        %v250 = vmul.f32 %v230, %v241
        %v251 = vmul.f32 %v231, %v241
        %v252 = vmul.f32 %v232, %v241
        %v253 = vmul.f32 %v233, %v241
        %v254 = vmul.f32 %v234, %v241
        %v255 = vmul.f32 %v235, %v241
        %v256 = vmul.f32 %v236, %v241
        %v257 = vmul.f32 %v237, %v241
        %v258 = vmul.f32 %v238, %v241
        %259 = vadd.xlane.f32.xlu0 %v243
        %v260 = vpop.xlane.xlu0 %259
        %261 = vadd.xlane.f32.xlu0 %v244
        %v262 = vpop.xlane.xlu0 %261
        %263 = vadd.xlane.f32.xlu0 %v245
        %v264 = vpop.xlane.xlu0 %263
        %265 = vadd.xlane.f32.xlu0 %v246
        %v266 = vpop.xlane.xlu0 %265
        %267 = vadd.xlane.f32.xlu0 %v247
        %v268 = vpop.xlane.xlu0 %267
        %269 = vadd.xlane.f32.xlu0 %v248
        %v270 = vpop.xlane.xlu0 %269
        %271 = vadd.xlane.f32.xlu0 %v249
        %v272 = vpop.xlane.xlu0 %271
        %273 = vadd.xlane.f32.xlu0 %v250
        %v274 = vpop.xlane.xlu0 %273
        %275 = vadd.xlane.f32.xlu0 %v251
        %v276 = vpop.xlane.xlu0 %275
        %277 = vadd.xlane.f32.xlu0 %v252
        %v278 = vpop.xlane.xlu0 %277
        %279 = vadd.xlane.f32.xlu0 %v253
        %v280 = vpop.xlane.xlu0 %279
        %281 = vadd.xlane.f32.xlu0 %v254
        %v282 = vpop.xlane.xlu0 %281
        %283 = vadd.xlane.f32.xlu0 %v255
        %v284 = vpop.xlane.xlu0 %283
        %285 = vadd.xlane.f32.xlu0 %v256
        %v286 = vpop.xlane.xlu0 %285
        %287 = vadd.xlane.f32.xlu0 %v257
        %v288 = vpop.xlane.xlu0 %287
        %289 = vadd.xlane.f32.xlu0 %v258
        %v290 = vpop.xlane.xlu0 %289
        %s291 = smul.u32 %s27, 128
        %v292 = vlaneseq
        %v293 = vshrl.u32 %v292, 7
        %v294 = vadd.s32 %v293, 8
        %v295 = vadd.s32 %v293, 16
        %v296 = vadd.s32 %v293, 24
        %v297 = vadd.s32 %v293, 32
        %v298 = vadd.s32 %v293, 40
        %v299 = vadd.s32 %v293, 48
        %v300 = vadd.s32 %v293, 56
        %v301 = vadd.s32 %v293, 64
        %v302 = vadd.s32 %v293, 72
        %v303 = vadd.s32 %v293, 80
        %v304 = vadd.s32 %v293, 88
        %v305 = vadd.s32 %v293, 96
        %v306 = vadd.s32 %v293, 104
        %v307 = vadd.s32 %v293, 112
        %v308 = vadd.s32 %v293, 120
        %v309 = vstv %s291
        %v310 = vadd.s32 %v309, %v293
        %v311 = vadd.s32 %v309, %v294
        %v312 = vadd.s32 %v309, %v295
        %v313 = vadd.s32 %v309, %v296
        %v314 = vadd.s32 %v309, %v297
        %v315 = vadd.s32 %v309, %v298
        %v316 = vadd.s32 %v309, %v299
        %v317 = vadd.s32 %v309, %v300
        %v318 = vadd.s32 %v309, %v301
        %v319 = vadd.s32 %v309, %v302
        %v320 = vadd.s32 %v309, %v303
        %v321 = vadd.s32 %v309, %v304
        %v322 = vadd.s32 %v309, %v305
        %v323 = vadd.s32 %v309, %v306
        %v324 = vadd.s32 %v309, %v307
        %v325 = vadd.s32 %v309, %v308
        %vm326 = vcmp.lt.s32.totalorder %v310, 300
        %vm327 = vcmp.lt.s32.totalorder %v311, 300
        %vm328 = vcmp.lt.s32.totalorder %v312, 300
        %vm329 = vcmp.lt.s32.totalorder %v313, 300
        %vm330 = vcmp.lt.s32.totalorder %v314, 300
        %vm331 = vcmp.lt.s32.totalorder %v315, 300
        %vm332 = vcmp.lt.s32.totalorder %v316, 300
        %vm333 = vcmp.lt.s32.totalorder %v317, 300
        %vm334 = vcmp.lt.s32.totalorder %v318, 300
        %vm335 = vcmp.lt.s32.totalorder %v319, 300
        %vm336 = vcmp.lt.s32.totalorder %v320, 300
        %vm337 = vcmp.lt.s32.totalorder %v321, 300
        %vm338 = vcmp.lt.s32.totalorder %v322, 300
        %vm339 = vcmp.lt.s32.totalorder %v323, 300
        %vm340 = vcmp.lt.s32.totalorder %v324, 300
        %vm341 = vcmp.lt.s32.totalorder %v325, 300
        %v342 = vsel %vm326, %v260, -inf
        %v343 = vsel %vm327, %v262, -inf
        %v344 = vsel %vm328, %v264, -inf
        %v345 = vsel %vm329, %v266, -inf
        %v346 = vsel %vm330, %v268, -inf
        %v347 = vsel %vm331, %v270, -inf
        %v348 = vsel %vm332, %v272, -inf
        %v349 = vsel %vm333, %v274, -inf
        %v350 = vsel %vm334, %v276, -inf
        %v351 = vsel %vm335, %v278, -inf
        %v352 = vsel %vm336, %v280, -inf
        %v353 = vsel %vm337, %v282, -inf
        %v354 = vsel %vm338, %v284, -inf
        %v355 = vsel %vm339, %v286, -inf
        %v356 = vsel %vm340, %v288, -inf
        %v357 = vsel %vm341, %v290, -inf
        %v358 = vld [vmem:[#allocation2] sm:$0x1]
        %v359 = vmax.f32 %v342, %v346
        %v360 = vmax.f32 %v343, %v347
        %v361 = vmax.f32 %v344, %v348
        %v362 = vmax.f32 %v345, %v349
        %v363 = vmax.f32 %v359, %v350
        %v364 = vmax.f32 %v360, %v351
        %v365 = vmax.f32 %v361, %v352
        %v366 = vmax.f32 %v362, %v353
        %v367 = vmax.f32 %v363, %v354
        %v368 = vmax.f32 %v364, %v355
        %v369 = vmax.f32 %v365, %v356
        %v370 = vmax.f32 %v366, %v357
        %v371 = vmax.f32 %v367, %v368
        %v372 = vmax.f32 %v369, %v370
        %v373 = vmax.f32 %v371, %v372
        %v374 = vrot.slane %v373, 4
        %v375 = vmax.f32 %v373, %v374
        %v376 = vrot.slane %v375, 2
        %v377 = vmax.f32 %v375, %v376
        %v378 = vrot.slane %v377, 1
        %v379 = vmax.f32 %v377, %v378
        %v380 = vmax.f32 %v358, %v379
        %v381 = vsub.f32 %v358, %v380
        %v382 = vmul.f32 %v381, 1.442695
        %v383 = vpow.pop %v382
        %v385 = vperm.slane %v380, 0
        %v387 = vsub.f32 %v342, %v385
        %v388 = vsub.f32 %v343, %v385
        %v389 = vsub.f32 %v344, %v385
        %v390 = vsub.f32 %v345, %v385
        %v391 = vsub.f32 %v346, %v385
        %v392 = vsub.f32 %v347, %v385
        %v393 = vsub.f32 %v348, %v385
        %v394 = vsub.f32 %v349, %v385
        %v395 = vsub.f32 %v350, %v385
        %v396 = vsub.f32 %v351, %v385
        %v397 = vsub.f32 %v352, %v385
        %v398 = vsub.f32 %v353, %v385
        %v399 = vsub.f32 %v354, %v385
        %v400 = vsub.f32 %v355, %v385
        %v401 = vsub.f32 %v356, %v385
        %v402 = vsub.f32 %v357, %v385
        %v403 = vmul.f32 %v387, 1.442695
        %v404 = vpow.pop %v403
        %v405 = vmul.f32 %v388, 1.442695
        %v406 = vpow.pop %v405
        %v407 = vmul.f32 %v389, 1.442695
        %v408 = vpow.pop %v407
        %v409 = vmul.f32 %v390, 1.442695
        %v410 = vpow.pop %v409
        %v411 = vmul.f32 %v391, 1.442695
        %v412 = vpow.pop %v411
        %v413 = vmul.f32 %v392, 1.442695
        %v414 = vpow.pop %v413
        %v415 = vmul.f32 %v393, 1.442695
        %v416 = vpow.pop %v415
        %v417 = vmul.f32 %v394, 1.442695
        %v418 = vpow.pop %v417
        %v419 = vmul.f32 %v395, 1.442695
        %v420 = vpow.pop %v419
        %v421 = vmul.f32 %v396, 1.442695
        %v422 = vpow.pop %v421
        %v423 = vmul.f32 %v397, 1.442695
        %v424 = vpow.pop %v423
        %v425 = vmul.f32 %v398, 1.442695
        %v426 = vpow.pop %v425
        %v427 = vmul.f32 %v399, 1.442695
        %v428 = vpow.pop %v427
        %v429 = vmul.f32 %v400, 1.442695
        %v430 = vpow.pop %v429
        %v431 = vmul.f32 %v401, 1.442695
        %v432 = vpow.pop %v431
        %v433 = vmul.f32 %v402, 1.442695
        %v434 = vpow.pop %v433
        %v435 = vld [vmem:[#allocation3] sm:$0x1]
        %v436 = vmul.f32 %v383, %v435
        %vm437 = vcmask 7168
        %v438 = vsel %vm437, %v404, 0.0
        %v439 = vsel %vm437, %v406, 0.0
        %v440 = vadd.f32 %v438, %v439
        %v441 = vsel %vm437, %v408, 0.0
        %v442 = vadd.f32 %v440, %v441
        %v443 = vsel %vm437, %v410, 0.0
        %v444 = vadd.f32 %v442, %v443
        %v445 = vsel %vm437, %v412, 0.0
        %v446 = vadd.f32 %v444, %v445
        %v447 = vsel %vm437, %v414, 0.0
        %v448 = vadd.f32 %v446, %v447
        %v449 = vsel %vm437, %v416, 0.0
        %v450 = vadd.f32 %v448, %v449
        %v451 = vsel %vm437, %v418, 0.0
        %v452 = vadd.f32 %v450, %v451
        %v453 = vsel %vm437, %v420, 0.0
        %v454 = vadd.f32 %v452, %v453
        %v455 = vsel %vm437, %v422, 0.0
        %v456 = vadd.f32 %v454, %v455
        %v457 = vsel %vm437, %v424, 0.0
        %v458 = vadd.f32 %v456, %v457
        %v459 = vsel %vm437, %v426, 0.0
        %v460 = vadd.f32 %v458, %v459
        %v461 = vsel %vm437, %v428, 0.0
        %v462 = vadd.f32 %v460, %v461
        %v463 = vsel %vm437, %v430, 0.0
        %v464 = vadd.f32 %v462, %v463
        %v465 = vsel %vm437, %v432, 0.0
        %v466 = vadd.f32 %v464, %v465
        %v467 = vsel %vm437, %v434, 0.0
        %v468 = vadd.f32 %v466, %v467
        %v469 = vrot.slane %v468, 4
        %v470 = vadd.f32 %v468, %v469
        %v471 = vrot.slane %v470, 2
        %v472 = vadd.f32 %v470, %v471
        %v473 = vrot.slane %v472, 1
        %v474 = vadd.f32 %v472, %v473
        %v475 = vadd.f32 %v436, %v474
        %vm476 = vcmask 0
        %477 = vst.msk [vmem:[#allocation3] sm:$0x1] %vm476, %v475
        %v478 = vld [vmem:[#allocation4] sm:$0x1]
        %480 = vset.pattern.permute.xlu0 0
        %481 = vperm.xlu0 %480, %v383
        %v482 = vpop.permute.xlu0 %481
        %v484 = vperm.slane %v482, 0
        %v485 = vmul.f32 %v484, %v478
        %487 = vset.pattern.permute.xlu0 0
        %488 = vperm.xlu0 %487, %v404
        %v489 = vpop.permute.xlu0 %488
        %492 = vset.pattern.permute.xlu0 0
        %493 = vperm.xlu0 %492, %v406
        %v494 = vpop.permute.xlu0 %493
        %497 = vset.pattern.permute.xlu0 0
        %498 = vperm.xlu0 %497, %v408
        %v499 = vpop.permute.xlu0 %498
        %502 = vset.pattern.permute.xlu0 0
        %503 = vperm.xlu0 %502, %v410
        %v504 = vpop.permute.xlu0 %503
        %507 = vset.pattern.permute.xlu0 0
        %508 = vperm.xlu0 %507, %v412
        %v509 = vpop.permute.xlu0 %508
        %512 = vset.pattern.permute.xlu0 0
        %513 = vperm.xlu0 %512, %v414
        %v514 = vpop.permute.xlu0 %513
        %517 = vset.pattern.permute.xlu0 0
        %518 = vperm.xlu0 %517, %v416
        %v519 = vpop.permute.xlu0 %518
        %522 = vset.pattern.permute.xlu0 0
        %523 = vperm.xlu0 %522, %v418
        %v524 = vpop.permute.xlu0 %523
        %527 = vset.pattern.permute.xlu0 0
        %528 = vperm.xlu0 %527, %v420
        %v529 = vpop.permute.xlu0 %528
        %532 = vset.pattern.permute.xlu0 0
        %533 = vperm.xlu0 %532, %v422
        %v534 = vpop.permute.xlu0 %533
        %537 = vset.pattern.permute.xlu0 0
        %538 = vperm.xlu0 %537, %v424
        %v539 = vpop.permute.xlu0 %538
        %542 = vset.pattern.permute.xlu0 0
        %543 = vperm.xlu0 %542, %v426
        %v544 = vpop.permute.xlu0 %543
        %547 = vset.pattern.permute.xlu0 0
        %548 = vperm.xlu0 %547, %v428
        %v549 = vpop.permute.xlu0 %548
        %552 = vset.pattern.permute.xlu0 0
        %553 = vperm.xlu0 %552, %v430
        %v554 = vpop.permute.xlu0 %553
        %557 = vset.pattern.permute.xlu0 0
        %558 = vperm.xlu0 %557, %v432
        %v559 = vpop.permute.xlu0 %558
        %562 = vset.pattern.permute.xlu0 0
        %563 = vperm.xlu0 %562, %v434
        %v564 = vpop.permute.xlu0 %563
        %v566 = vmul.f32 %v489, %v223
        %v567 = vmul.f32 %v494, %v224
        %v568 = vmul.f32 %v499, %v225
        %v569 = vmul.f32 %v504, %v226
        %v570 = vmul.f32 %v509, %v227
        %v571 = vmul.f32 %v514, %v228
        %v572 = vmul.f32 %v519, %v229
        %v573 = vmul.f32 %v524, %v230
        %v574 = vmul.f32 %v529, %v231
        %v575 = vmul.f32 %v534, %v232
        %v576 = vmul.f32 %v539, %v233
        %v577 = vmul.f32 %v544, %v234
        %v578 = vmul.f32 %v549, %v235
        %v579 = vmul.f32 %v554, %v236
        %v580 = vmul.f32 %v559, %v237
        %v581 = vmul.f32 %v564, %v238
        %v582 = vadd.f32 %v566, %v567
        %v583 = vadd.f32 %v582, %v568
        %v584 = vadd.f32 %v583, %v569
        %v585 = vadd.f32 %v584, %v570
        %v586 = vadd.f32 %v585, %v571
        %v587 = vadd.f32 %v586, %v572
        %v588 = vadd.f32 %v587, %v573
        %v589 = vadd.f32 %v588, %v574
        %v590 = vadd.f32 %v589, %v575
        %v591 = vadd.f32 %v590, %v576
        %v592 = vadd.f32 %v591, %v577
        %v593 = vadd.f32 %v592, %v578
        %v594 = vadd.f32 %v593, %v579
        %v595 = vadd.f32 %v594, %v580
        %v596 = vadd.f32 %v595, %v581
        %v597 = vrot.slane %v596, 4
        %v598 = vadd.f32 %v596, %v597
        %v599 = vrot.slane %v598, 2
        %v600 = vadd.f32 %v598, %v599
        %v601 = vrot.slane %v600, 1
        %v602 = vadd.f32 %v600, %v601
        %v603 = vadd.f32 %v485, %v602
        %604 = vst [vmem:[#allocation4] sm:$0x1] %v603
        %605 = vst.msk [vmem:[#allocation2] sm:$0x1] %vm476, %v380
        %p606 = scmp.eq.s32.totalorder %s27, 2
        // Predicated region
        $region41: #{tpu_custom_call.1} parent=27 // pred_check
          %p607 = pneg %p606
        $region42: #{tpu_custom_call.1} parent=27 // pred_check_branch
          %609 = sbr.rel (%p607) target = $region44
        $region43: #{tpu_custom_call.1} parent=27 // pred_region
          %v610 = vld [vmem:[#allocation4] sm:$0x1]
          %v611 = vld [vmem:[#allocation3] sm:$0x1]
          %613 = vset.pattern.permute.xlu0 0
          %614 = vperm.xlu0 %613, %v611
          %v615 = vpop.permute.xlu0 %614
          %v617 = vperm.slane %v615, 0
          %v618 = vrcp.pop %v617
          %v619 = vmul.f32 %v617, %v618
          %v620 = vsub.f32 1.0, %v619
          %v621 = vmul.f32 %v618, %v620
          %v622 = vadd.f32 %v618, %v621
          %vm623 = vweird.f32 %v617
          %vm624 = vweird.f32 %v618
          %vm625 = vmor %vm623, %vm624
          %v626 = vsel %vm625, %v618, %v622
          %v627 = vand.u32 2147483647, %v617
          %vm628 = vcmp.eq.f32.partialorder %v627, 8.507059e+37
          %v629 = vand.u32 %v617, 2147483648
          %v630 = vor.u32 1.1754944e-38, %v629
          %v631 = vsel %vm628, %v630, %v626
          %v632 = vmul.f32 %v610, %v631
          %633 = vst [vmem:[%s213] sm:$0x1] %v632
        $region44: #{tpu_custom_call.1} parent=27 // pred_fallthru
          _
        %s634 = sand.u32 %s96, 1
        %s635 = scalar_lea.sflag [#allocation7], %s634
        %s636 = sand.u32 %s96, 1
        %s637 = scalar_lea.vmem [#allocation10], %s636
        // Predicated region
        $region45: #{tpu_custom_call.1} parent=27 // pred_check
          %p638 = pneg %p106
        $region46: #{tpu_custom_call.1} parent=27 // pred_check_branch
          %640 = sbr.rel (%p638) target = $region48
        $region47: #{tpu_custom_call.1} parent=27 // pred_region
          %642 = vsyncadd %s635, 0
          %s643 = scalar_lea.hbm %s2, %s26
          %s645 = sshll.u32 %s637, 4
          %s646 = int_to_ptr.vmem [resolvable:$true] %s645
          %s647 = sshll.u32 %s643, 4
          %s648 = int_to_ptr.hbm [resolvable:$true] %s647
          %650 = dma.vmem_to_hbm [thread:$0]  %s646, 16, %s648, %s635
        $region48: #{tpu_custom_call.1} parent=27 // pred_fallthru
          _
      $region28: #{tpu_custom_call.1} parent=5 // pred_fallthru
        _
      %p651 = scmp.le.s32.totalorder 2, %s17
      // Predicated region
      $region49: #{tpu_custom_call.1} parent=5 // pred_check
        %p652 = pneg %p651
      $region50: #{tpu_custom_call.1} parent=5 // pred_check_branch
        %654 = sbr.rel (%p652) target = $region52
      $region51: #{tpu_custom_call.1} parent=5 // pred_region
        %s655 = ssub.s32 %s17, 2
        // Predicated region
        $region53: #{tpu_custom_call.1} parent=51 // pred_check
          %p656 = pneg %p112
        $region54: #{tpu_custom_call.1} parent=51 // pred_check_branch
          %658 = sbr.rel (%p656) target = $region56
        $region55: #{tpu_custom_call.1} parent=51 // pred_region
          %s659 = sand.u32 %s97, 1
          %s660 = scalar_lea.sflag [#allocation7], %s659
          %s661 = sand.u32 %s97, 1
          %s662 = scalar_lea.vmem [#allocation10], %s661
          %664 = dma.done %s660, 16
        $region56: #{tpu_custom_call.1} parent=51 // pred_fallthru
          _
      $region52: #{tpu_custom_call.1} parent=5 // pred_fallthru
        _
    $region6: #{tpu_custom_call.1} parent=1 // loop_footer
      %s21 = sadd.s32 1, %s17
    $region7: #{tpu_custom_call.1} parent=1 // loop_footer_branch
      %16 = sbr.rel target = $region3
    $region8: #{tpu_custom_call.1} parent=1 // loop_exit
      _
    %665 = vsyncpa [#allocation6], 1
    %s666 = scalar_lea.sflag [#allocation6], 1
    %667 = vsyncpa %s666, 1
    %668 = vsyncpa [#allocation9], 1
    %s669 = scalar_lea.sflag [#allocation9], 1
    %670 = vsyncpa %s669, 1
    %671 = vsyncpa [#allocation7], 1
    %s672 = scalar_lea.sflag [#allocation7], 1
    %673 = vsyncpa %s672, 1

</llo_original>
